<compile_context>
chip_gen: v5e
topology: v5e:2x2
jax: 0.10.0
libtpu: 0.0.40
codegen_flags: <defaults>
</compile_context>

<pallas_src>
import jax
import jax.numpy as jnp
from jax.experimental import pallas as pl
from jax.experimental.pallas import tpu as pltpu


def _swish_kernel(x_ref, o_ref):
    x = x_ref[...]
    # f32 compute: sigmoid on EUP, mul on VPU; mem-bound, so upcast is free
    # and keeps bf16 inputs accurate (v5e has no bf16 VPU/EUP anyway).
    xf = x.astype(jnp.float32)
    o_ref[...] = (xf * jax.nn.sigmoid(xf)).astype(o_ref.dtype)


def _sublane_granularity(dtype) -> int:
    # Native sublane tile height per dtype width: (8,128) f32, (16,128) bf16,
    # (32,128) int8/fp8.
    return {4: 8, 2: 16, 1: 32}.get(jnp.dtype(dtype).itemsize, 8)


def _target_block_bytes() -> int:
    """Generation-aware block size: 8 MiB on 128-MiB-VMEM chips (v5e/v6e),
    6 MiB on 64-MiB-VMEM chips (v7x) or when the query fails."""
    try:
        vmem = pltpu.get_tpu_info().vmem_capacity_bytes
    except Exception:  # pragma: no cover - unknown platform / interpret mode
        vmem = None
    if vmem is not None and vmem > 96 * 1024 * 1024:
        return 8 * 1024 * 1024
    return 6 * 1024 * 1024


def _swish_jnp(x: jax.Array) -> jax.Array:
    xf = x.astype(jnp.float32)
    return (xf * jax.nn.sigmoid(xf)).astype(x.dtype)


def swish_me(x: jax.Array) -> jax.Array:
    """Elementwise swish: x * sigmoid(x). Works for any shape/rank/dtype."""
    orig_shape = x.shape
    orig_dtype = x.dtype
    n = x.size
    if n == 0:
        return x

    sub = _sublane_granularity(orig_dtype)
    itemsize = jnp.dtype(orig_dtype).itemsize

    # Widest lane-dense last dim that divides n exactly (no pad / no copy),
    # preferring widths that leave at least one native sublane tile of rows.
    lanes = None
    for w in (1024, 512, 256, 128):
        if n % w == 0 and n // w >= sub:
            lanes = w
            break
    if lanes is None:
        for w in (1024, 512, 256, 128):
            if n % w == 0:
                lanes = w
                break

    if lanes is None:
        # Ragged element count: plain jnp swish (XLA fuses -> 2N bytes, optimal;
        # avoids the pad+concat+slice extra HBM round trips).
        return _swish_jnp(x)

    rows = n // lanes
    x2d = jnp.ravel(x).reshape(rows, lanes)

    # Row tile: target ~block_bytes per block, rounded to the dtype's sublane
    # granularity; never larger than the (rounded-down) row count.
    block_bytes = _target_block_bytes()
    tile = max(block_bytes // (lanes * itemsize), sub)
    tile = (tile // sub) * sub
    if rows >= sub:
        tile = min(tile, (rows // sub) * sub)
    else:
        tile = rows  # block dim == full array dim is always legal

    grid = pl.cdiv(rows, tile)
    # Megacore: if the whole tensor fits one block but is splittable, force
    # >= 2 balanced steps so both v7x TensorCores stream in parallel.
    if grid == 1 and rows >= 2 * sub:
        tile = pl.cdiv(pl.cdiv(rows, sub), 2) * sub
        grid = pl.cdiv(rows, tile)

    tile_bytes = tile * lanes * itemsize
    # in + out, each double-buffered (~4x block), plus a few MiB headroom.
    vmem_limit = max(16 * 1024 * 1024, 4 * tile_bytes + 4 * 1024 * 1024)

    out2d = pl.pallas_call(
        _swish_kernel,
        out_shape=jax.ShapeDtypeStruct((rows, lanes), orig_dtype),
        grid_spec=pltpu.PrefetchScalarGridSpec(
            num_scalar_prefetch=0,
            grid=(grid,),
            in_specs=[pl.BlockSpec((tile, lanes), lambda i: (i, 0))],
            out_specs=pl.BlockSpec((tile, lanes), lambda i: (i, 0)),
        ),
        compiler_params=pltpu.CompilerParams(
            dimension_semantics=("parallel",),
            vmem_limit_bytes=int(vmem_limit),
        ),
        cost_estimate=pl.CostEstimate(
            flops=4 * n,
            transcendentals=n,
            bytes_accessed=2 * n * itemsize,
        ),
    )(x2d)

    return out2d.reshape(orig_shape)


def swish_ref(x: jax.Array) -> jax.Array:
    return _swish_jnp(x)


if __name__ == "__main__":
    key = jax.random.PRNGKey(0)

    # Primary case: NCHW conv activation, as the PyTorch module would see it.
    x = jax.random.normal(key, (2, 4, 16, 16), dtype=jnp.float32)
    y = swish_me(x)
    jax.block_until_ready(y)
    y_ref = swish_ref(x)
    assert y.shape == x.shape and y.dtype == x.dtype
    assert jnp.allclose(y, y_ref, atol=1e-6, rtol=1e-6)

    # bf16 activations (dtype-aware sublane granularity path).
    xb = jax.random.normal(jax.random.PRNGKey(1), (2, 4, 16, 16), dtype=jnp.bfloat16)
    yb = swish_me(xb)
    jax.block_until_ready(yb)
    assert yb.dtype == jnp.bfloat16 and yb.shape == xb.shape
    assert jnp.allclose(
        yb.astype(jnp.float32), swish_ref(xb).astype(jnp.float32),
        atol=1e-2, rtol=1e-2,
    )

    # Larger case: exercises the grid >= 2 megacore split and pipelining.
    xl = jax.random.normal(jax.random.PRNGKey(3), (2, 32, 64, 64), dtype=jnp.float32)
    yl = swish_me(xl)
    jax.block_until_ready(yl)
    assert jnp.allclose(yl, swish_ref(xl), atol=1e-6, rtol=1e-6)

    # Ragged size (plain-jnp fallback path, no extra HBM traffic).
    xr = jax.random.normal(jax.random.PRNGKey(2), (3, 5, 7), dtype=jnp.float32)
    yr = swish_me(xr)
    jax.block_until_ready(yr)
    assert jnp.allclose(yr, swish_ref(xr), atol=1e-6, rtol=1e-6)

    print("KERNEL_OK")
</pallas_src>

<mosaic_0001>
module attributes {stable_mosaic.version = 11 : i64} {
  func.func @_swish_kernel(%arg0: i32, %arg1: memref<8x256xf32, #tpu.memory_space<vmem>>, %arg2: memref<8x256xf32, #tpu.memory_space<vmem>>) attributes {dimension_semantics = [#tpu.dimension_semantics<parallel>], iteration_bounds = array<i64: 1>, scalar_prefetch = 0 : i64, scratch_operands = 0 : i64, tpu.core_type = #tpu.core_type<tc>, window_params = [{transform_indices = @transform_0, window_bounds = array<i64: 8, 256>}, {transform_indices = @transform_1, window_bounds = array<i64: 8, 256>}]} {
    %c0 = arith.constant 0 : index
    %c0_0 = arith.constant 0 : index
    %0 = vector.load %arg1[%c0, %c0_0] : memref<8x256xf32, #tpu.memory_space<vmem>>, vector<8x256xf32>
    %1 = arith.negf %0 : vector<8x256xf32>
    %2 = math.exp %1 : vector<8x256xf32>
    %cst = arith.constant 1.000000e+00 : f32
    %3 = vector.broadcast %cst : f32 to vector<8x256xf32>
    %4 = arith.addf %3, %2 : vector<8x256xf32>
    %5 = arith.divf %3, %4 : vector<8x256xf32>
    %6 = arith.mulf %0, %5 : vector<8x256xf32>
    %c0_1 = arith.constant 0 : index
    %c0_2 = arith.constant 0 : index
    %7 = vector.load %arg2[%c0_1, %c0_2] : memref<8x256xf32, #tpu.memory_space<vmem>>, vector<8x256xf32>
    tpu.vector_store %arg2[%c0_1, %c0_2], %6 {strides = array<i32>} : memref<8x256xf32, #tpu.memory_space<vmem>>, vector<8x256xf32>,
    return
  }
  func.func @transform_0(%arg0: i32) -> (i32, i32) {
    %c0_i32 = arith.constant 0 : i32
    %c0_i32_0 = arith.constant 0 : i32
    return %arg0, %c0_i32 : i32, i32
  }
  func.func @transform_1(%arg0: i32) -> (i32, i32) {
    %c0_i32 = arith.constant 0 : i32
    %c0_i32_0 = arith.constant 0 : i32
    return %arg0, %c0_i32 : i32, i32
  }
}

</mosaic_0001>

<llo_original>
// kernel: tpu_custom_call.1
$region0: #{tpu_custom_call.1}
  #allocation0 [shape = 'u32[]', space=smem, size = 0x4, offset = 0x4, fixed_abs, tag = 'smem constant byte address 0x4 - core index']
  #allocation1 [shape = 'u32[72,128]{1,0:T(1,128)}', space=vmem, size = 0x9000, scoped, tag = 'internal scratch']
  %s0 = inlined_call_operand.hbm [shape: f32[8,256], index: 0, kind: input, shape index: {}]
  %s1 = inlined_call_operand.hbm [shape: f32[8,256], index: 1, kind: output, shape index: {}]
  %s2 = sld [smem:[#allocation0]]
  $region18: #{tpu_custom_call.1} parent=0
    _
  %s4 = ssub.s32 1, %s2
  %s5 = scalar_select 0, %s4, %s2
  $region1: #{tpu_custom_call.1} parent=0
    #allocation2 [shape = 'u8[8192]{0}', space=vmem, size = 0x2000, scoped, tag = 'input window, operand 0, single buffered']
    #allocation3 [shape = 's32[1]{0}', space=sflag, size = 0x4, scoped, tag = 'scoped memory for tpu_custom_call.1']
    #allocation4 [shape = 's32[1]{0}', space=sflag, size = 0x4, scoped, tag = 'scoped memory for tpu_custom_call.1']
    #allocation5 [shape = 'u8[8192]{0}', space=vmem, size = 0x2000, scoped, tag = 'output window, operand 0, single buffered']
    %6 = vsyncpa [#allocation3], 0
    %7 = vsyncpa [#allocation4], 0
    // Predicated region
    $region2: #{tpu_custom_call.1} parent=1 // pred_check
      _
    $region3: #{tpu_custom_call.1} parent=1 // pred_check_branch
      %9 = sbr.rel (0) target = $region5
    $region4: #{tpu_custom_call.1} parent=1 // pred_region
      %11 = vsyncadd [#allocation3], 0
      %s13 = sshll.u32 %s0, 4
      %s14 = int_to_ptr.hbm [resolvable:$true] %s13
      %s15 = sshll.u32 [#allocation2], 4
      %s16 = int_to_ptr.vmem [resolvable:$true] %s15
      %18 = dma.hbm_to_vmem [thread:$0]  %s14, 256, %s16, [#allocation3]
    $region5: #{tpu_custom_call.1} parent=1 // pred_fallthru
      _
    // Predicated region
    $region6: #{tpu_custom_call.1} parent=1 // pred_check
      _
    $region7: #{tpu_custom_call.1} parent=1 // pred_check_branch
      %20 = sbr.rel (0) target = $region9
    $region8: #{tpu_custom_call.1} parent=1 // pred_region
      %22 = dma.done [#allocation3], 256
    $region9: #{tpu_custom_call.1} parent=1 // pred_fallthru
      _
    %v23 = vld [vmem:[#allocation2] sm:$0xff]
    %v24 = vld [vmem:[#allocation2 + $0x8] sm:$0xff]
    %v25 = vxor.u32 %v23, 2147483648
    %v26 = vxor.u32 %v24, 2147483648
    %v27 = vmul.f32 %v25, 1.442695
    %v28 = vpow.pop %v27
    %v29 = vmul.f32 %v26, 1.442695
    %v30 = vpow.pop %v29
    %v31 = vadd.f32 %v28, 1.0
    %v32 = vadd.f32 %v30, 1.0
    %v33 = vrcp.pop %v31
    %v34 = vmul.f32 %v31, %v33
    %v35 = vsub.f32 1.0, %v34
    %v36 = vmul.f32 %v33, %v35
    %v37 = vadd.f32 %v33, %v36
    %vm38 = vweird.f32 %v31
    %vm39 = vweird.f32 %v33
    %vm40 = vmor %vm38, %vm39
    %v41 = vsel %vm40, %v33, %v37
    %v42 = vand.u32 2147483647, %v31
    %vm43 = vcmp.eq.f32.partialorder %v42, 8.507059e+37
    %v44 = vand.u32 %v31, 2147483648
    %v45 = vor.u32 1.1754944e-38, %v44
    %v46 = vsel %vm43, %v45, %v41
    %v47 = vmul.f32 1.0, %v46
    %v48 = vrcp.pop %v32
    %v49 = vmul.f32 %v32, %v48
    %v50 = vsub.f32 1.0, %v49
    %v51 = vmul.f32 %v48, %v50
    %v52 = vadd.f32 %v48, %v51
    %vm53 = vweird.f32 %v32
    %vm54 = vweird.f32 %v48
    %vm55 = vmor %vm53, %vm54
    %v56 = vsel %vm55, %v48, %v52
    %v57 = vand.u32 2147483647, %v32
    %vm58 = vcmp.eq.f32.partialorder %v57, 8.507059e+37
    %v59 = vand.u32 %v32, 2147483648
    %v60 = vor.u32 1.1754944e-38, %v59
    %v61 = vsel %vm58, %v60, %v56
    %v62 = vmul.f32 1.0, %v61
    %v63 = vmul.f32 %v23, %v47
    %v64 = vmul.f32 %v24, %v62
    %65 = vst [vmem:[#allocation5] sm:$0xff] %v63
    %66 = vst [vmem:[#allocation5 + $0x8] sm:$0xff] %v64
    // Predicated region
    $region10: #{tpu_custom_call.1} parent=1 // pred_check
      _
    $region11: #{tpu_custom_call.1} parent=1 // pred_check_branch
      %68 = sbr.rel (0) target = $region13
    $region12: #{tpu_custom_call.1} parent=1 // pred_region
      %70 = vsyncadd [#allocation4], 0
      %s72 = sshll.u32 [#allocation5], 4
      %s73 = int_to_ptr.vmem [resolvable:$true] %s72
      %s74 = sshll.u32 %s1, 4
      %s75 = int_to_ptr.hbm [resolvable:$true] %s74
      %77 = dma.vmem_to_hbm [thread:$0]  %s73, 256, %s75, [#allocation4]
    $region13: #{tpu_custom_call.1} parent=1 // pred_fallthru
      _
    // Predicated region
    $region14: #{tpu_custom_call.1} parent=1 // pred_check
      _
    $region15: #{tpu_custom_call.1} parent=1 // pred_check_branch
      %79 = sbr.rel (0) target = $region17
    $region16: #{tpu_custom_call.1} parent=1 // pred_region
      %81 = dma.done [#allocation4], 256
    $region17: #{tpu_custom_call.1} parent=1 // pred_fallthru
      _
    %82 = vsyncpa [#allocation3], 1
    %83 = vsyncpa [#allocation4], 1

</llo_original>
